<compile_context>
chip_gen: v5e
topology: v5e:2x2
jax: 0.10.0
libtpu: 0.0.40
codegen_flags: <defaults>
</compile_context>

<pallas_src>
import math

import jax
import jax.numpy as jnp
from jax.experimental import pallas as pl
from jax.experimental.pallas import tpu as pltpu


def _identity_copy_kernel(x_ref, o_ref):
    # TODO(synk): BaseModel.forward raises NotImplementedError; subclasses define the
    # real compute.  A tiled identity copy is the faithful debug-only placeholder.
    o_ref[...] = x_ref[...]


def _pallas_identity(x, *, tile_budget_bytes=4 << 20, vmem_limit_bytes=32 << 20):
    """Debug-only identity pass.

    Tiles the leading axis of `x` (original shape preserved end to end, so no
    relayout copies), with ~4 MiB tiles and a ragged-safe pl.cdiv grid.  The
    pipeline footprint (in + out) x 2 double-buffers <= 16 MiB, inside the
    explicit 32 MiB VMEM limit on every generation.
    """
    if x.ndim < 2 or x.size == 0:
        # TODO(synk): sub-2D / empty tensors have no meaningful (8,128) tiling;
        # the base class defines no compute, so return x directly.
        return x

    lead = x.shape[0]
    trailing = x.shape[1:]
    itemsize = jnp.dtype(x.dtype).itemsize
    trailing_bytes = max(1, math.prod(trailing) * itemsize)

    # Largest leading-axis tile that keeps a single block under the byte budget.
    tr = max(1, min(lead, tile_budget_bytes // trailing_bytes))
    grid = (pl.cdiv(lead, tr),)  # Pallas handles the ragged last block.

    block = (tr,) + trailing
    n_trailing = len(trailing)

    def idx(i):
        return (i,) + (0,) * n_trailing

    total_bytes = x.size * itemsize
    return pl.pallas_call(
        _identity_copy_kernel,
        out_shape=jax.ShapeDtypeStruct(x.shape, x.dtype),
        grid_spec=pl.GridSpec(
            grid=grid,
            in_specs=[pl.BlockSpec(block, idx)],
            out_specs=pl.BlockSpec(block, idx),
        ),
        cost_estimate=pl.CostEstimate(
            flops=0, transcendentals=0, bytes_accessed=2 * total_bytes
        ),
        compiler_params=pltpu.CompilerParams(
            # Only v7x (2 TCs) benefits; neutral and safe on v5e/v6e.
            dimension_semantics=("parallel",),
            vmem_limit_bytes=vmem_limit_bytes,
        ),
    )(x)


class BaseModelPallas:
    """JAX/Pallas port of the abstract BaseModel (metadata bookkeeping + placeholder forward)."""

    def __init__(
        self,
        input_shape,
        source_id_attribute_dims_dict,
        target_attribute_dims,
        debug_identity_copy=False,
    ):
        self.input_shape = input_shape
        self.source_id_attribute_dims_dict = source_id_attribute_dims_dict
        self.target_attribute_dims = target_attribute_dims
        self.num_attributes = len(self.target_attribute_dims)
        for _, source_attribute_dims in self.source_id_attribute_dims_dict.items():
            assert len(source_attribute_dims) == self.num_attributes
        self.num_domains = len(self.source_id_attribute_dims_dict) + 1
        self.target_domain_id = self.num_domains - 1
        # Pallas identity copy is demonstration-only; default path is `return x`.
        self.debug_identity_copy = debug_identity_copy

    def forward(self, x, domain_id):
        # domain_id is metadata only in the base class.  Validate only concrete host
        # ints; never call int() on a traced/device value (avoids a device sync).
        if isinstance(domain_id, int):
            assert 0 <= domain_id < self.num_domains

        if not self.debug_identity_copy:
            # TODO(synk): BaseModel.forward raises NotImplementedError in the
            # reference; the fastest correct placeholder is to return x unchanged
            # (zero HBM traffic on every TPU generation).
            return x

        return _pallas_identity(x)

    def encode(self, x):
        # TODO(synk): abstract in the reference; no Pallas equivalent to translate.
        raise NotImplementedError()

    def freeze_encoder(self):
        # TODO(synk): abstract in the reference (optimizer/param freezing is host-side).
        raise NotImplementedError()

    def train_epoch(self, epoch, data_list, domain_ids, learning_rule):
        # TODO(synk): abstract training loop; not a kernel-level concept.
        raise NotImplementedError()

    def val_epoch(self, epoch, data_list, domain_ids, learning_rule):
        # TODO(synk): abstract validation loop; not a kernel-level concept.
        raise NotImplementedError()


if __name__ == "__main__":
    key = jax.random.PRNGKey(0)
    B, C, H, W = 2, 4, 16, 16  # input_shape = (C, H, W)
    x = jax.random.normal(key, (B, C, H, W), dtype=jnp.float32)

    # Metadata sanity checks (mirrors the PyTorch __init__ semantics).
    model = BaseModelPallas(
        input_shape=(C, H, W),
        source_id_attribute_dims_dict={0: [3, 5], 1: [3, 5]},
        target_attribute_dims=[3, 5],
    )
    assert model.num_attributes == 2
    assert model.num_domains == 3
    assert model.target_domain_id == 2

    # Default (recommended) path: zero-cost passthrough.
    y_fast = model.forward(x, domain_id=model.target_domain_id)
    assert y_fast is x  # no kernel launch, no HBM traffic

    # Debug path: exercise the Pallas identity kernel once.
    debug_model = BaseModelPallas(
        input_shape=(C, H, W),
        source_id_attribute_dims_dict={0: [3, 5], 1: [3, 5]},
        target_attribute_dims=[3, 5],
        debug_identity_copy=True,
    )
    y = debug_model.forward(x, domain_id=debug_model.target_domain_id)
    y = jax.block_until_ready(y)
    assert y.shape == x.shape and y.dtype == x.dtype
    assert bool(jnp.allclose(y, x))
    print("KERNEL_OK")
</pallas_src>

<mosaic_0001>
module attributes {stable_mosaic.version = 11 : i64} {
  func.func @_identity_copy_kernel(%arg0: i32, %arg1: memref<2x4x16x16xf32, #tpu.memory_space<vmem>>, %arg2: memref<2x4x16x16xf32, #tpu.memory_space<vmem>>) attributes {dimension_semantics = [#tpu.dimension_semantics<parallel>], iteration_bounds = array<i64: 1>, scalar_prefetch = 0 : i64, scratch_operands = 0 : i64, tpu.core_type = #tpu.core_type<tc>, window_params = [{transform_indices = @transform_0, window_bounds = array<i64: 2, 4, 16, 16>}, {transform_indices = @transform_1, window_bounds = array<i64: 2, 4, 16, 16>}]} {
    %c0 = arith.constant 0 : index
    %c0_0 = arith.constant 0 : index
    %c0_1 = arith.constant 0 : index
    %c0_2 = arith.constant 0 : index
    %0 = vector.load %arg1[%c0, %c0_0, %c0_1, %c0_2] : memref<2x4x16x16xf32, #tpu.memory_space<vmem>>, vector<2x4x16x16xf32>
    %c0_3 = arith.constant 0 : index
    %c0_4 = arith.constant 0 : index
    %c0_5 = arith.constant 0 : index
    %c0_6 = arith.constant 0 : index
    %1 = vector.load %arg2[%c0_3, %c0_4, %c0_5, %c0_6] : memref<2x4x16x16xf32, #tpu.memory_space<vmem>>, vector<2x4x16x16xf32>
    tpu.vector_store %arg2[%c0_3, %c0_4, %c0_5, %c0_6], %0 {strides = array<i32>} : memref<2x4x16x16xf32, #tpu.memory_space<vmem>>, vector<2x4x16x16xf32>,
    return
  }
  func.func @transform_0(%arg0: i32) -> (i32, i32, i32, i32) {
    %c0_i32 = arith.constant 0 : i32
    %c0_i32_0 = arith.constant 0 : i32
    %c0_i32_1 = arith.constant 0 : i32
    %c0_i32_2 = arith.constant 0 : i32
    return %arg0, %c0_i32, %c0_i32_0, %c0_i32_1 : i32, i32, i32, i32
  }
  func.func @transform_1(%arg0: i32) -> (i32, i32, i32, i32) {
    %c0_i32 = arith.constant 0 : i32
    %c0_i32_0 = arith.constant 0 : i32
    %c0_i32_1 = arith.constant 0 : i32
    %c0_i32_2 = arith.constant 0 : i32
    return %arg0, %c0_i32, %c0_i32_0, %c0_i32_1 : i32, i32, i32, i32
  }
}

</mosaic_0001>

<llo_original>
// kernel: tpu_custom_call.1
$region0: #{tpu_custom_call.1}
  #allocation0 [shape = 'u32[]', space=smem, size = 0x4, offset = 0x4, fixed_abs, tag = 'smem constant byte address 0x4 - core index']
  #allocation1 [shape = 'u32[72,128]{1,0:T(1,128)}', space=vmem, size = 0x9000, scoped, tag = 'internal scratch']
  %s0 = inlined_call_operand.hbm [shape: f32[2,4,16,16], index: 0, kind: input, shape index: {}]
  %s1 = inlined_call_operand.hbm [shape: f32[2,4,16,16], index: 1, kind: output, shape index: {}]
  %s2 = sld [smem:[#allocation0]]
  $region18: #{tpu_custom_call.1} parent=0
    _
  %s4 = ssub.s32 1, %s2
  %s5 = scalar_select 0, %s4, %s2
  $region1: #{tpu_custom_call.1} parent=0
    #allocation2 [shape = 'u8[65536]{0}', space=vmem, size = 0x10000, scoped, tag = 'input window, operand 0, single buffered']
    #allocation3 [shape = 's32[1]{0}', space=sflag, size = 0x4, scoped, tag = 'scoped memory for tpu_custom_call.1']
    #allocation4 [shape = 's32[1]{0}', space=sflag, size = 0x4, scoped, tag = 'scoped memory for tpu_custom_call.1']
    #allocation5 [shape = 'u8[65536]{0}', space=vmem, size = 0x10000, scoped, tag = 'output window, operand 0, single buffered']
    %6 = vsyncpa [#allocation3], 0
    %7 = vsyncpa [#allocation4], 0
    // Predicated region
    $region2: #{tpu_custom_call.1} parent=1 // pred_check
      _
    $region3: #{tpu_custom_call.1} parent=1 // pred_check_branch
      %9 = sbr.rel (0) target = $region5
    $region4: #{tpu_custom_call.1} parent=1 // pred_region
      %11 = vsyncadd [#allocation3], 0
      %s12 = sshll.u32 %s0, 4
      %s13 = int_to_ptr.hbm [resolvable:$true] %s12
      %s14 = sshll.u32 [#allocation2], 4
      %s15 = int_to_ptr.vmem [resolvable:$true] %s14
      %20 = dma.hbm_to_vmem [thread:$0]  %s13, 2048, %s15, [#allocation3], 128, 128, 8
    $region5: #{tpu_custom_call.1} parent=1 // pred_fallthru
      _
    // Predicated region
    $region6: #{tpu_custom_call.1} parent=1 // pred_check
      _
    $region7: #{tpu_custom_call.1} parent=1 // pred_check_branch
      %22 = sbr.rel (0) target = $region9
    $region8: #{tpu_custom_call.1} parent=1 // pred_region
      %24 = dma.done [#allocation3], 2048
    $region9: #{tpu_custom_call.1} parent=1 // pred_fallthru
      _
    %v25 = vld [vmem:[#allocation2] sm:$0xff]
    %v26 = vld [vmem:[#allocation2 + $0x8] sm:$0xff]
    %v27 = vld [vmem:[#allocation2 + $0x10] sm:$0xff]
    %v28 = vld [vmem:[#allocation2 + $0x18] sm:$0xff]
    %v29 = vld [vmem:[#allocation2 + $0x20] sm:$0xff]
    %v30 = vld [vmem:[#allocation2 + $0x28] sm:$0xff]
    %v31 = vld [vmem:[#allocation2 + $0x30] sm:$0xff]
    %v32 = vld [vmem:[#allocation2 + $0x38] sm:$0xff]
    %v33 = vld [vmem:[#allocation2 + $0x40] sm:$0xff]
    %v34 = vld [vmem:[#allocation2 + $0x48] sm:$0xff]
    %v35 = vld [vmem:[#allocation2 + $0x50] sm:$0xff]
    %v36 = vld [vmem:[#allocation2 + $0x58] sm:$0xff]
    %v37 = vld [vmem:[#allocation2 + $0x60] sm:$0xff]
    %v38 = vld [vmem:[#allocation2 + $0x68] sm:$0xff]
    %v39 = vld [vmem:[#allocation2 + $0x70] sm:$0xff]
    %v40 = vld [vmem:[#allocation2 + $0x78] sm:$0xff]
    %vm41 = vcmask 130048
    %42 = vst.msk [vmem:[#allocation5] sm:$0xff] %vm41, %v25
    %43 = vst.msk [vmem:[#allocation5 + $0x8] sm:$0xff] %vm41, %v26
    %44 = vst.msk [vmem:[#allocation5 + $0x10] sm:$0xff] %vm41, %v27
    %45 = vst.msk [vmem:[#allocation5 + $0x18] sm:$0xff] %vm41, %v28
    %46 = vst.msk [vmem:[#allocation5 + $0x20] sm:$0xff] %vm41, %v29
    %47 = vst.msk [vmem:[#allocation5 + $0x28] sm:$0xff] %vm41, %v30
    %48 = vst.msk [vmem:[#allocation5 + $0x30] sm:$0xff] %vm41, %v31
    %49 = vst.msk [vmem:[#allocation5 + $0x38] sm:$0xff] %vm41, %v32
    %50 = vst.msk [vmem:[#allocation5 + $0x40] sm:$0xff] %vm41, %v33
    %51 = vst.msk [vmem:[#allocation5 + $0x48] sm:$0xff] %vm41, %v34
    %52 = vst.msk [vmem:[#allocation5 + $0x50] sm:$0xff] %vm41, %v35
    %53 = vst.msk [vmem:[#allocation5 + $0x58] sm:$0xff] %vm41, %v36
    %54 = vst.msk [vmem:[#allocation5 + $0x60] sm:$0xff] %vm41, %v37
    %55 = vst.msk [vmem:[#allocation5 + $0x68] sm:$0xff] %vm41, %v38
    %56 = vst.msk [vmem:[#allocation5 + $0x70] sm:$0xff] %vm41, %v39
    %57 = vst.msk [vmem:[#allocation5 + $0x78] sm:$0xff] %vm41, %v40
    // Predicated region
    $region10: #{tpu_custom_call.1} parent=1 // pred_check
      _
    $region11: #{tpu_custom_call.1} parent=1 // pred_check_branch
      %59 = sbr.rel (0) target = $region13
    $region12: #{tpu_custom_call.1} parent=1 // pred_region
      %61 = vsyncadd [#allocation4], 0
      %s62 = sshll.u32 [#allocation5], 4
      %s63 = int_to_ptr.vmem [resolvable:$true] %s62
      %s64 = sshll.u32 %s1, 4
      %s65 = int_to_ptr.hbm [resolvable:$true] %s64
      %70 = dma.vmem_to_hbm [thread:$0]  %s63, 2048, %s65, [#allocation4], 128, 128, 8
    $region13: #{tpu_custom_call.1} parent=1 // pred_fallthru
      _
    // Predicated region
    $region14: #{tpu_custom_call.1} parent=1 // pred_check
      _
    $region15: #{tpu_custom_call.1} parent=1 // pred_check_branch
      %72 = sbr.rel (0) target = $region17
    $region16: #{tpu_custom_call.1} parent=1 // pred_region
      %74 = dma.done [#allocation4], 2048
    $region17: #{tpu_custom_call.1} parent=1 // pred_fallthru
      _
    %75 = vsyncpa [#allocation3], 1
    %76 = vsyncpa [#allocation4], 1

</llo_original>
